<compile_context>
chip_gen: v7x
topology: tpu7x:2x2x1
jax: 0.10.0
libtpu: 0.0.40
codegen_flags: <defaults>
</compile_context>

<pallas_src>
import functools

import jax
import jax.numpy as jnp
from jax.experimental import pallas as pl
from jax.experimental.pallas import tpu as pltpu

_LANE = 128
_SUBLANE = 8


def _round_up(x, m):
    return (x + m - 1) // m * m


def _lstm_kernel(maxlen_ref, x_ref, len_ref, w_ref, b_ref, out_ref,
                 h_ref, c_ref, *, hidden_pad):
    """Single grid step: full LSTM recurrence over the (padded) sequence."""
    Hp = hidden_pad
    T, Bp, _ = x_ref.shape

    h_ref[...] = jnp.zeros_like(h_ref)
    c_ref[...] = jnp.zeros_like(c_ref)

    # Hoisted loop invariants (JAX does not CSE broadcast_in_dim inside loops).
    bias = jnp.broadcast_to(b_ref[...], (Bp, 4 * Hp))   # (Bp, 4Hp) f32
    lens = len_ref[...]                                  # (Bp, 1) int32

    # Only run the timesteps that at least one sequence actually uses.
    steps = jnp.minimum(maxlen_ref[0], T)

    @pl.loop(0, steps)
    def _(t):
        h_prev = h_ref[...]                              # (Bp, Hp) f32
        c_prev = c_ref[...]
        x_t = x_ref[t]                                   # (Bp, Ep) bf16

        # Fused gate matmul: one MXU pass over [x_t, h_prev] @ [W_ih^T; W_hh^T].
        xh = jnp.concatenate([x_t, h_prev.astype(x_t.dtype)], axis=1)
        gates = jnp.dot(xh, w_ref[...],
                        preferred_element_type=jnp.float32) + bias  # (Bp, 4Hp)

        # PyTorch gate order: i, f, g, o — each a full 128-lane-aligned slice.
        i_g = jax.nn.sigmoid(gates[:, 0 * Hp:1 * Hp])
        f_g = jax.nn.sigmoid(gates[:, 1 * Hp:2 * Hp])
        g_g = jnp.tanh(gates[:, 2 * Hp:3 * Hp])
        o_g = jax.nn.sigmoid(gates[:, 3 * Hp:4 * Hp])

        c_new = f_g * c_prev + i_g * g_g
        h_new = o_g * jnp.tanh(c_new)

        # pack_padded_sequence semantics: freeze state once t >= left_len[b].
        mask = lens > t                                  # (Bp, 1) bool
        h_ref[...] = jnp.where(mask, h_new, h_prev)
        c_ref[...] = jnp.where(mask, c_new, c_prev)

    out_ref[...] = h_ref[...]


def smiles_rnn_forward(left, left_len, params):
    """left: (B, T) int token ids; left_len: (B,) valid lengths. Returns (B, H) f32."""
    emb = params["embedding"]                 # (V, E) f32
    w_ih = params["w_ih"]                     # (4H, E) f32, PyTorch layout
    w_hh = params["w_hh"]                     # (4H, H) f32
    b = (params["b_ih"] + params["b_hh"]).astype(jnp.float32)   # (4H,)

    B, T = left.shape
    V, E = emb.shape
    H = w_hh.shape[1]

    Ep = _round_up(E, _LANE)
    Hp = _round_up(H, _LANE)
    Bp = _round_up(B, _SUBLANE)

    # Fused, gate-padded weight (Ep+Hp, 4*Hp) and bias (1, 4*Hp).
    # Padded rows/columns are zero so padded lanes produce h = c = 0 forever.
    w_f = jnp.zeros((Ep + Hp, 4 * Hp), jnp.float32)
    b_f = jnp.zeros((1, 4 * Hp), jnp.float32)
    for g in range(4):
        w_f = w_f.at[:E, g * Hp:g * Hp + H].set(w_ih[g * H:(g + 1) * H, :].T)
        w_f = w_f.at[Ep:Ep + H, g * Hp:g * Hp + H].set(w_hh[g * H:(g + 1) * H, :].T)
        b_f = b_f.at[0, g * Hp:g * Hp + H].set(b[g * H:(g + 1) * H])
    w_f = w_f.astype(jnp.bfloat16)

    # Embedding lookup straight into padded, time-major layout (no float transpose).
    emb_pad = jnp.zeros((V, Ep), jnp.float32).at[:, :E].set(emb).astype(jnp.bfloat16)
    tok = jnp.zeros((T, Bp), jnp.int32).at[:, :B].set(left.T.astype(jnp.int32))
    x = jnp.take(emb_pad, tok, axis=0)                    # (T, Bp, Ep) bf16

    lens = jnp.zeros((Bp, 1), jnp.int32).at[:B, 0].set(left_len.astype(jnp.int32))
    max_len = jnp.max(lens).reshape(1).astype(jnp.int32)  # scalar-prefetched

    kernel = functools.partial(_lstm_kernel, hidden_pad=Hp)

    out = pl.pallas_call(
        kernel,
        out_shape=jax.ShapeDtypeStruct((Bp, Hp), jnp.float32),
        grid_spec=pltpu.PrefetchScalarGridSpec(
            num_scalar_prefetch=1,                        # max_len -> SMEM
            grid=(1,),
            in_specs=[
                pl.BlockSpec((T, Bp, Ep), lambda i, ml: (0, 0, 0)),      # x
                pl.BlockSpec((Bp, 1), lambda i, ml: (0, 0)),             # lengths
                pl.BlockSpec((Ep + Hp, 4 * Hp), lambda i, ml: (0, 0)),   # fused W
                pl.BlockSpec((1, 4 * Hp), lambda i, ml: (0, 0)),         # fused bias
            ],
            out_specs=pl.BlockSpec((Bp, Hp), lambda i, ml: (0, 0)),
            scratch_shapes=[
                pltpu.VMEM((Bp, Hp), jnp.float32),        # h state
                pltpu.VMEM((Bp, Hp), jnp.float32),        # c state
            ],
        ),
        compiler_params=pltpu.CompilerParams(
            dimension_semantics=("arbitrary",),
        ),
    )(max_len, x, lens, w_f, b_f)

    return out[:B, :H]


def smiles_rnn_reference(left, left_len, params):
    """Pure-JAX reference mirroring the kernel numerics (bf16 dot, f32 gates)."""
    emb = params["embedding"]
    w_ih = params["w_ih"].astype(jnp.bfloat16)
    w_hh = params["w_hh"].astype(jnp.bfloat16)
    b = (params["b_ih"] + params["b_hh"]).astype(jnp.float32)
    B, T = left.shape
    H = params["w_hh"].shape[1]
    x = jnp.take(emb, left, axis=0).astype(jnp.bfloat16)   # (B, T, E)
    lens = left_len.astype(jnp.int32)

    def step(carry, t):
        h, c = carry
        x_t = x[:, t, :]
        gates = (jnp.dot(x_t, w_ih.T, preferred_element_type=jnp.float32)
                 + jnp.dot(h.astype(jnp.bfloat16), w_hh.T,
                           preferred_element_type=jnp.float32) + b)
        i_g = jax.nn.sigmoid(gates[:, 0 * H:1 * H])
        f_g = jax.nn.sigmoid(gates[:, 1 * H:2 * H])
        g_g = jnp.tanh(gates[:, 2 * H:3 * H])
        o_g = jax.nn.sigmoid(gates[:, 3 * H:4 * H])
        c_new = f_g * c + i_g * g_g
        h_new = o_g * jnp.tanh(c_new)
        mask = (lens > t)[:, None]
        return (jnp.where(mask, h_new, h), jnp.where(mask, c_new, c)), None

    h0 = jnp.zeros((B, H), jnp.float32)
    c0 = jnp.zeros((B, H), jnp.float32)
    (h, _), _ = jax.lax.scan(step, (h0, c0), jnp.arange(T))
    return h


def init_params(key, vocab_size, embed_size, hidden_size):
    k_emb, k_ih, k_hh, k_bih, k_bhh = jax.random.split(key, 5)
    # Embedding: truncated normal with threshold 0.05 (as in truncated_normal()).
    embedding = 0.05 * jax.random.truncated_normal(
        k_emb, -1.0, 1.0, (vocab_size, embed_size), dtype=jnp.float32)
    # LSTM weights: PyTorch default U(-1/sqrt(H), 1/sqrt(H)), gate order i,f,g,o.
    bound = 1.0 / float(hidden_size) ** 0.5
    w_ih = jax.random.uniform(k_ih, (4 * hidden_size, embed_size),
                              minval=-bound, maxval=bound, dtype=jnp.float32)
    w_hh = jax.random.uniform(k_hh, (4 * hidden_size, hidden_size),
                              minval=-bound, maxval=bound, dtype=jnp.float32)
    b_ih = jax.random.uniform(k_bih, (4 * hidden_size,),
                              minval=-bound, maxval=bound, dtype=jnp.float32)
    b_hh = jax.random.uniform(k_bhh, (4 * hidden_size,),
                              minval=-bound, maxval=bound, dtype=jnp.float32)
    return {"embedding": embedding, "w_ih": w_ih, "w_hh": w_hh,
            "b_ih": b_ih, "b_hh": b_hh}


if __name__ == "__main__":
    vocab_size, embed_size, hidden_size = 32, 16, 32
    B, T = 2, 8

    key = jax.random.PRNGKey(0)
    k_p, k_tok = jax.random.split(key)
    params = init_params(k_p, vocab_size, embed_size, hidden_size)

    left = jax.random.randint(k_tok, (B, T), 0, vocab_size, dtype=jnp.int32)
    left_len = jnp.array([8, 5], dtype=jnp.int32)

    out = smiles_rnn_forward(left, left_len, params)
    jax.block_until_ready(out)
    assert out.shape == (B, hidden_size)

    ref = smiles_rnn_reference(left, left_len, params)
    jax.block_until_ready(ref)
    assert bool(jnp.allclose(out, ref, atol=1e-2, rtol=1e-2)), "mismatch vs reference"

    print("KERNEL_OK")
</pallas_src>

<mosaic_0001>
module attributes {stable_mosaic.version = 11 : i64} {
  func.func @_lstm_kernel(%arg0: i32, %arg1: memref<1xi32, #tpu.memory_space<smem>>, %arg2: memref<8x8x128xbf16, #tpu.memory_space<vmem>>, %arg3: memref<8x1xi32, #tpu.memory_space<vmem>>, %arg4: memref<256x512xbf16, #tpu.memory_space<vmem>>, %arg5: memref<1x512xf32, #tpu.memory_space<vmem>>, %arg6: memref<8x128xf32, #tpu.memory_space<vmem>>, %arg7: memref<8x128xf32, #tpu.memory_space<vmem>>, %arg8: memref<8x128xf32, #tpu.memory_space<vmem>>) attributes {dimension_semantics = [#tpu.dimension_semantics<arbitrary>], iteration_bounds = array<i64: 1>, scalar_prefetch = 1 : i64, scratch_operands = 2 : i64, tpu.core_type = #tpu.core_type<tc>, window_params = [{pipeline_mode = #tpu.pipeline_mode<synchronous>, transform_indices = @transform_0, window_bounds = array<i64: 8, 8, 128>}, {pipeline_mode = #tpu.pipeline_mode<synchronous>, transform_indices = @transform_1, window_bounds = array<i64: 8, 1>}, {pipeline_mode = #tpu.pipeline_mode<synchronous>, transform_indices = @transform_2, window_bounds = array<i64: 256, 512>}, {pipeline_mode = #tpu.pipeline_mode<synchronous>, transform_indices = @transform_3, window_bounds = array<i64: 1, 512>}, {pipeline_mode = #tpu.pipeline_mode<synchronous>, transform_indices = @transform_4, window_bounds = array<i64: 8, 128>}]} {
    %cst = arith.constant 0.000000e+00 : f32
    %0 = vector.broadcast %cst : f32 to vector<8x128xf32>
    %c0 = arith.constant 0 : index
    %c0_0 = arith.constant 0 : index
    %1 = vector.load %arg7[%c0, %c0_0] : memref<8x128xf32, #tpu.memory_space<vmem>>, vector<8x128xf32>
    tpu.vector_store %arg7[%c0, %c0_0], %0 {strides = array<i32>} : memref<8x128xf32, #tpu.memory_space<vmem>>, vector<8x128xf32>,
    %cst_1 = arith.constant 0.000000e+00 : f32
    %2 = vector.broadcast %cst_1 : f32 to vector<8x128xf32>
    %c0_2 = arith.constant 0 : index
    %c0_3 = arith.constant 0 : index
    %3 = vector.load %arg8[%c0_2, %c0_3] : memref<8x128xf32, #tpu.memory_space<vmem>>, vector<8x128xf32>
    tpu.vector_store %arg8[%c0_2, %c0_3], %2 {strides = array<i32>} : memref<8x128xf32, #tpu.memory_space<vmem>>, vector<8x128xf32>,
    %c0_4 = arith.constant 0 : index
    %c0_5 = arith.constant 0 : index
    %4 = vector.load %arg5[%c0_4, %c0_5] : memref<1x512xf32, #tpu.memory_space<vmem>>, vector<1x512xf32>
    %5 = vector.shape_cast %4 : vector<1x512xf32> to vector<1x512xf32>
    %6 = vector.broadcast %5 : vector<1x512xf32> to vector<8x512xf32>
    %c0_6 = arith.constant 0 : index
    %c0_7 = arith.constant 0 : index
    %7 = vector.load %arg3[%c0_6, %c0_7] : memref<8x1xi32, #tpu.memory_space<vmem>>, vector<8x1xi32>
    %c0_8 = arith.constant 0 : index
    %8 = memref.load %arg1[%c0_8] : memref<1xi32, #tpu.memory_space<smem>>
    %c8_i32 = arith.constant 8 : i32
    %9 = arith.minsi %8, %c8_i32 : i32
    %c0_i32 = arith.constant 0 : i32
    %10 = arith.subi %9, %c0_i32 : i32
    %c1_i32 = arith.constant 1 : i32
    %c1_i32_9 = arith.constant 1 : i32
    %11 = arith.subi %c1_i32, %c1_i32_9 : i32
    %12 = arith.addi %10, %11 : i32
    %c1_i32_10 = arith.constant 1 : i32
    %13 = arith.divsi %12, %c1_i32_10 : i32
    %c1_i32_11 = arith.constant 1 : i32
    %c0_i32_12 = arith.constant 0 : i32
    %c0_i32_13 = arith.constant 0 : i32
    %14 = arith.subi %13, %c0_i32_13 : i32
    %15 = arith.addi %c0_i32_13, %14 : i32
    %c1_i32_14 = arith.constant 1 : i32
    scf.for %arg9 = %c0_i32_13 to %15 step %c1_i32_14  : i32 {
      %18 = arith.muli %arg9, %c1_i32_11 : i32
      %19 = arith.addi %c0_i32_12, %18 : i32
      %c0_19 = arith.constant 0 : index
      %c0_20 = arith.constant 0 : index
      %20 = vector.load %arg7[%c0_19, %c0_20] : memref<8x128xf32, #tpu.memory_space<vmem>>, vector<8x128xf32>
      %c0_21 = arith.constant 0 : index
      %c0_22 = arith.constant 0 : index
      %21 = vector.load %arg8[%c0_21, %c0_22] : memref<8x128xf32, #tpu.memory_space<vmem>>, vector<8x128xf32>
      %22 = arith.index_cast %19 : i32 to index
      %c0_23 = arith.constant 0 : index
      %c0_24 = arith.constant 0 : index
      %23 = vector.load %arg2[%22, %c0_23, %c0_24] : memref<8x8x128xbf16, #tpu.memory_space<vmem>>, vector<1x8x128xbf16>
      %24 = vector.shape_cast %23 : vector<1x8x128xbf16> to vector<8x128xbf16>
      %25 = arith.truncf %20 : vector<8x128xf32> to vector<8x128xbf16>
      %26 = tpu.concatenate %24, %25 in 1 : vector<8x128xbf16>, vector<8x128xbf16> -> vector<8x256xbf16>
      %c0_25 = arith.constant 0 : index
      %c0_26 = arith.constant 0 : index
      %27 = vector.load %arg4[%c0_25, %c0_26] : memref<256x512xbf16, #tpu.memory_space<vmem>>, vector<256x512xbf16>
      %cst_27 = arith.constant dense<0.000000e+00> : vector<8x512xf32>
      %28 = tpu.matmul %26, %27, %cst_27 {dimension_numbers = #tpu.dot_dimension_numbers<[1], [0], [0], [1], [0, 0, 1, 1], [], []>} : vector<8x256xbf16>, vector<256x512xbf16>, vector<8x512xf32> -> vector<8x512xf32>
      %29 = arith.addf %28, %6 : vector<8x512xf32>
      %30 = vector.extract_strided_slice %29 {offsets = [0, 0], sizes = [8, 128], strides = [1, 1]} : vector<8x512xf32> to vector<8x128xf32>
      %31 = arith.negf %30 : vector<8x128xf32>
      %32 = math.exp %31 : vector<8x128xf32>
      %cst_28 = arith.constant 1.000000e+00 : f32
      %33 = vector.broadcast %cst_28 : f32 to vector<8x128xf32>
      %34 = arith.addf %33, %32 : vector<8x128xf32>
      %35 = arith.divf %33, %34 : vector<8x128xf32>
      %36 = vector.extract_strided_slice %29 {offsets = [0, 128], sizes = [8, 128], strides = [1, 1]} : vector<8x512xf32> to vector<8x128xf32>
      %37 = arith.negf %36 : vector<8x128xf32>
      %38 = math.exp %37 : vector<8x128xf32>
      %cst_29 = arith.constant 1.000000e+00 : f32
      %39 = vector.broadcast %cst_29 : f32 to vector<8x128xf32>
      %40 = arith.addf %39, %38 : vector<8x128xf32>
      %41 = arith.divf %39, %40 : vector<8x128xf32>
      %42 = vector.extract_strided_slice %29 {offsets = [0, 256], sizes = [8, 128], strides = [1, 1]} : vector<8x512xf32> to vector<8x128xf32>
      %43 = math.tanh %42 : vector<8x128xf32>
      %44 = vector.extract_strided_slice %29 {offsets = [0, 384], sizes = [8, 128], strides = [1, 1]} : vector<8x512xf32> to vector<8x128xf32>
      %45 = arith.negf %44 : vector<8x128xf32>
      %46 = math.exp %45 : vector<8x128xf32>
      %cst_30 = arith.constant 1.000000e+00 : f32
      %47 = vector.broadcast %cst_30 : f32 to vector<8x128xf32>
      %48 = arith.addf %47, %46 : vector<8x128xf32>
      %49 = arith.divf %47, %48 : vector<8x128xf32>
      %50 = arith.mulf %41, %21 : vector<8x128xf32>
      %51 = arith.mulf %35, %43 : vector<8x128xf32>
      %52 = arith.addf %50, %51 : vector<8x128xf32>
      %53 = math.tanh %52 : vector<8x128xf32>
      %54 = arith.mulf %49, %53 : vector<8x128xf32>
      %55 = vector.broadcast %19 : i32 to vector<8x1xi32>
      %56 = arith.cmpi sgt, %7, %55 : vector<8x1xi32>
      %57 = vector.shape_cast %56 : vector<8x1xi1> to vector<8x1xi1>
      %58 = vector.broadcast %57 : vector<8x1xi1> to vector<8x128xi1>
      %59 = arith.select %58, %54, %20 : vector<8x128xi1>, vector<8x128xf32>
      %c0_31 = arith.constant 0 : index
      %c0_32 = arith.constant 0 : index
      %60 = vector.load %arg7[%c0_31, %c0_32] : memref<8x128xf32, #tpu.memory_space<vmem>>, vector<8x128xf32>
      tpu.vector_store %arg7[%c0_31, %c0_32], %59 {strides = array<i32>} : memref<8x128xf32, #tpu.memory_space<vmem>>, vector<8x128xf32>,
      %61 = vector.shape_cast %56 : vector<8x1xi1> to vector<8x1xi1>
      %62 = vector.broadcast %61 : vector<8x1xi1> to vector<8x128xi1>
      %63 = arith.select %62, %52, %21 : vector<8x128xi1>, vector<8x128xf32>
      %c0_33 = arith.constant 0 : index
      %c0_34 = arith.constant 0 : index
      %64 = vector.load %arg8[%c0_33, %c0_34] : memref<8x128xf32, #tpu.memory_space<vmem>>, vector<8x128xf32>
      tpu.vector_store %arg8[%c0_33, %c0_34], %63 {strides = array<i32>} : memref<8x128xf32, #tpu.memory_space<vmem>>, vector<8x128xf32>,
    }
    %c0_15 = arith.constant 0 : index
    %c0_16 = arith.constant 0 : index
    %16 = vector.load %arg7[%c0_15, %c0_16] : memref<8x128xf32, #tpu.memory_space<vmem>>, vector<8x128xf32>
    %c0_17 = arith.constant 0 : index
    %c0_18 = arith.constant 0 : index
    %17 = vector.load %arg6[%c0_17, %c0_18] : memref<8x128xf32, #tpu.memory_space<vmem>>, vector<8x128xf32>
    tpu.vector_store %arg6[%c0_17, %c0_18], %16 {strides = array<i32>} : memref<8x128xf32, #tpu.memory_space<vmem>>, vector<8x128xf32>,
    return
  }
  func.func @transform_0(%arg0: i32, %arg1: memref<1xi32, #tpu.memory_space<smem>>) -> (i32, i32, i32) {
    %c0_i32 = arith.constant 0 : i32
    %c0_i32_0 = arith.constant 0 : i32
    %c0_i32_1 = arith.constant 0 : i32
    %c0_i32_2 = arith.constant 0 : i32
    return %c0_i32, %c0_i32_0, %c0_i32_1 : i32, i32, i32
  }
  func.func @transform_1(%arg0: i32, %arg1: memref<1xi32, #tpu.memory_space<smem>>) -> (i32, i32) {
    %c0_i32 = arith.constant 0 : i32
    %c0_i32_0 = arith.constant 0 : i32
    %c0_i32_1 = arith.constant 0 : i32
    return %c0_i32, %c0_i32_0 : i32, i32
  }
  func.func @transform_2(%arg0: i32, %arg1: memref<1xi32, #tpu.memory_space<smem>>) -> (i32, i32) {
    %c0_i32 = arith.constant 0 : i32
    %c0_i32_0 = arith.constant 0 : i32
    %c0_i32_1 = arith.constant 0 : i32
    return %c0_i32, %c0_i32_0 : i32, i32
  }
  func.func @transform_3(%arg0: i32, %arg1: memref<1xi32, #tpu.memory_space<smem>>) -> (i32, i32) {
    %c0_i32 = arith.constant 0 : i32
    %c0_i32_0 = arith.constant 0 : i32
    %c0_i32_1 = arith.constant 0 : i32
    return %c0_i32, %c0_i32_0 : i32, i32
  }
  func.func @transform_4(%arg0: i32, %arg1: memref<1xi32, #tpu.memory_space<smem>>) -> (i32, i32) {
    %c0_i32 = arith.constant 0 : i32
    %c0_i32_0 = arith.constant 0 : i32
    %c0_i32_1 = arith.constant 0 : i32
    return %c0_i32, %c0_i32_0 : i32, i32
  }
}

</mosaic_0001>

<llo_original>
// kernel: tpu_custom_call.1
$region0: #{tpu_custom_call.1}
  #allocation0 [shape = 'u32[]', space=smem, size = 0x4, offset = 0x4, fixed_abs, tag = 'smem constant byte address 0x4 - core index']
  #allocation1 [shape = 'u32[144,128]{1,0:T(1,128)}', space=vmem, size = 0x12000, scoped, tag = 'internal scratch']
  #allocation2 [shape = 'f32[8,128]{1,0:T(8,128)}', space=vmem, size = 0x1000, scoped, tag = 'scratch operand']
  #allocation3 [shape = 'f32[8,128]{1,0:T(8,128)}', space=vmem, size = 0x1000, scoped, tag = 'scratch operand']
  #allocation4 [shape = 's32[1]{0}', space=sflag, size = 0x4, scoped, tag = 'scoped memory for tpu_custom_call.1']
  #allocation5 [shape = 's32[1]{0:T(128)S(6)}', space=smem, size = 0x200, scoped, tag = 'prefetched SMEM operand 0']
  %s0 = inlined_call_operand.<no memory space> [shape: s32[1], index: 0, kind: input, shape index: {}]
  %s1 = inlined_call_operand.hbm [shape: bf16[8,8,128], index: 1, kind: input, shape index: {}]
  %s2 = inlined_call_operand.vmem [shape: s32[8,1], index: 2, kind: input, shape index: {}]
  %s3 = inlined_call_operand.hbm [shape: bf16[256,512], index: 3, kind: input, shape index: {}]
  %s4 = inlined_call_operand.vmem [shape: f32[1,512], index: 4, kind: input, shape index: {}]
  %s5 = inlined_call_operand.hbm [shape: f32[8,128], index: 5, kind: output, shape index: {}]
  %s6 = sld [smem:[#allocation0]]
  $region41: #{tpu_custom_call.1} parent=0
    _
  %s8 = ssub.s32 1, %s6
  %s9 = scalar_select 0, %s8, %s6
  %10 = sst [smem:[#allocation5]] %s0
  $region1: #{tpu_custom_call.1} parent=0
    #allocation6 [shape = 'u8[16384]{0}', space=vmem, size = 0x4000, scoped, tag = 'input window, operand 1, single buffered']
    #allocation7 [shape = 's32[1]{0}', space=sflag, size = 0x4, scoped, tag = 'scoped memory for tpu_custom_call.1']
    #allocation8 [shape = 's32[1]{0}', space=sflag, size = 0x4, scoped, tag = 'scoped memory for tpu_custom_call.1']
    #allocation9 [shape = 'u8[262144]{0}', space=vmem, size = 0x40000, scoped, tag = 'input window, operand 3, single buffered']
    #allocation10 [shape = 's32[1]{0}', space=sflag, size = 0x4, scoped, tag = 'scoped memory for tpu_custom_call.1']
    #allocation11 [shape = 'u8[4096]{0}', space=vmem, size = 0x1000, scoped, tag = 'output window, operand 0, single buffered']
    %11 = vsyncpa [#allocation7], 0
    %12 = vsyncpa [#allocation10], 0
    %13 = vsyncpa [#allocation8], 0
    // Predicated region
    $region2: #{tpu_custom_call.1} parent=1 // pred_check
      _
    $region3: #{tpu_custom_call.1} parent=1 // pred_check_branch
      %15 = sbr.rel (0) target = $region5
    $region4: #{tpu_custom_call.1} parent=1 // pred_region
      %s17 = ssub.s32 512, 512
      %18 = vsyncadd [#allocation7], %s17
      %s19 = sshll.u32 [#allocation6], 4
      %s20 = int_to_ptr.vmem [resolvable:$true] %s19
      %25 = dma.hbm_to_vmem [thread:$0]  %s1, 512, %s20, [#allocation7], 64, 64, 4
    $region5: #{tpu_custom_call.1} parent=1 // pred_fallthru
      _
    // Predicated region
    $region6: #{tpu_custom_call.1} parent=1 // pred_check
      _
    $region7: #{tpu_custom_call.1} parent=1 // pred_check_branch
      %27 = sbr.rel (0) target = $region9
    $region8: #{tpu_custom_call.1} parent=1 // pred_region
      _
    $region9: #{tpu_custom_call.1} parent=1 // pred_fallthru
      _
    // Predicated region
    $region10: #{tpu_custom_call.1} parent=1 // pred_check
      _
    $region11: #{tpu_custom_call.1} parent=1 // pred_check_branch
      %29 = sbr.rel (0) target = $region13
    $region12: #{tpu_custom_call.1} parent=1 // pred_region
      %s31 = ssub.s32 8192, 8192
      %32 = vsyncadd [#allocation10], %s31
      %s33 = sshll.u32 [#allocation9], 4
      %s34 = int_to_ptr.vmem [resolvable:$true] %s33
      %39 = dma.hbm_to_vmem [thread:$0]  %s3, 8192, %s34, [#allocation10], 256, 256, 16
    $region13: #{tpu_custom_call.1} parent=1 // pred_fallthru
      _
    // Predicated region
    $region14: #{tpu_custom_call.1} parent=1 // pred_check
      _
    $region15: #{tpu_custom_call.1} parent=1 // pred_check_branch
      %41 = sbr.rel (0) target = $region17
    $region16: #{tpu_custom_call.1} parent=1 // pred_region
      _
    $region17: #{tpu_custom_call.1} parent=1 // pred_fallthru
      _
    // Predicated region
    $region18: #{tpu_custom_call.1} parent=1 // pred_check
      _
    $region19: #{tpu_custom_call.1} parent=1 // pred_check_branch
      %43 = sbr.rel (0) target = $region21
    $region20: #{tpu_custom_call.1} parent=1 // pred_region
      %44 = dma.done [#allocation7], 512
    $region21: #{tpu_custom_call.1} parent=1 // pred_fallthru
      _
    // Predicated region
    $region22: #{tpu_custom_call.1} parent=1 // pred_check
      _
    $region23: #{tpu_custom_call.1} parent=1 // pred_check_branch
      %46 = sbr.rel (0) target = $region25
    $region24: #{tpu_custom_call.1} parent=1 // pred_region
      %47 = dma.done [#allocation10], 8192
    $region25: #{tpu_custom_call.1} parent=1 // pred_fallthru
      _
    %48 = vst [vmem:[#allocation2] sm:$0xff] 0.0
    %49 = vst [vmem:[#allocation3] sm:$0xff] 0.0
    %v50 = vld [vmem:[%s4] sm:$0xf]
    %v52 = vlaneseq
    %v53 = vshrl.u32 %v52, 7
    %v54 = vsub.s32 0, %v53
    %v55 = vrot.slane %v50, %v54
    %v56 = vlaneseq
    %v57 = vshrl.u32 %v56, 7
    %v58 = vsub.s32 1, %v57
    %v59 = vrot.slane %v50, %v58
    %v60 = vlaneseq
    %v61 = vshrl.u32 %v60, 7
    %v62 = vsub.s32 2, %v61
    %v63 = vrot.slane %v50, %v62
    %v64 = vlaneseq
    %v65 = vshrl.u32 %v64, 7
    %v66 = vsub.s32 3, %v65
    %v67 = vrot.slane %v50, %v66
    %v72 = vld [vmem:[%s2] sm:$0xff]
    %s73 = sld [smem:[#allocation5]]
    %p74 = scmp.lt.s32.totalorder %s73, 8
    %s75 = scalar_select %p74, %s73, 8
    // While loop
    $region26: #{tpu_custom_call.1} parent=1 // loop_pre_header
      _
    $region27: #{tpu_custom_call.1} parent=1 // loop_header
      %s77 = sphi 0, %s79
      %p78 = scmp.ge.s32.totalorder %s77, %s75
    $region28: #{tpu_custom_call.1} parent=1 // loop_header_branch
      %81 = sbr.rel (%p78) target = $region32
    $region29: #{tpu_custom_call.1} parent=1 // loop_body
      %v82 = vld [vmem:[#allocation2] sm:$0xff]
      %v83 = vld [vmem:[#allocation3] sm:$0xff]
      %s84 = smul.addr %s77, 4
      %s85 = scalar_lea.vmem [#allocation6], %s84
      %v86 = vld [vmem:[%s85] sm:$0xf]
      %v87 = vpack.c.bf16 %v82, %v82
      %v88 = vld [vmem:[#allocation9] sm:$0xff]
      %v89 = vld [vmem:[#allocation9 + $0x8] sm:$0xff]
      %v90 = vld [vmem:[#allocation9 + $0x10] sm:$0xff]
      %v91 = vld [vmem:[#allocation9 + $0x18] sm:$0xff]
      %v92 = vld [vmem:[#allocation9 + $0x20] sm:$0xff]
      %v93 = vld [vmem:[#allocation9 + $0x28] sm:$0xff]
      %v94 = vld [vmem:[#allocation9 + $0x30] sm:$0xff]
      %v95 = vld [vmem:[#allocation9 + $0x38] sm:$0xff]
      %v96 = vld [vmem:[#allocation9 + $0x40] sm:$0xff]
      %v97 = vld [vmem:[#allocation9 + $0x48] sm:$0xff]
      %v98 = vld [vmem:[#allocation9 + $0x50] sm:$0xff]
      %v99 = vld [vmem:[#allocation9 + $0x58] sm:$0xff]
      %v100 = vld [vmem:[#allocation9 + $0x60] sm:$0xff]
      %v101 = vld [vmem:[#allocation9 + $0x68] sm:$0xff]
      %v102 = vld [vmem:[#allocation9 + $0x70] sm:$0xff]
      %v103 = vld [vmem:[#allocation9 + $0x78] sm:$0xff]
      %v104 = vld [vmem:[#allocation9 + $0x80] sm:$0xff]
      %v105 = vld [vmem:[#allocation9 + $0x88] sm:$0xff]
      %v106 = vld [vmem:[#allocation9 + $0x90] sm:$0xff]
      %v107 = vld [vmem:[#allocation9 + $0x98] sm:$0xff]
      %v108 = vld [vmem:[#allocation9 + $0xa0] sm:$0xff]
      %v109 = vld [vmem:[#allocation9 + $0xa8] sm:$0xff]
      %v110 = vld [vmem:[#allocation9 + $0xb0] sm:$0xff]
      %v111 = vld [vmem:[#allocation9 + $0xb8] sm:$0xff]
      %v112 = vld [vmem:[#allocation9 + $0xc0] sm:$0xff]
      %v113 = vld [vmem:[#allocation9 + $0xc8] sm:$0xff]
      %v114 = vld [vmem:[#allocation9 + $0xd0] sm:$0xff]
      %v115 = vld [vmem:[#allocation9 + $0xd8] sm:$0xff]
      %v116 = vld [vmem:[#allocation9 + $0xe0] sm:$0xff]
      %v117 = vld [vmem:[#allocation9 + $0xe8] sm:$0xff]
      %v118 = vld [vmem:[#allocation9 + $0xf0] sm:$0xff]
      %v119 = vld [vmem:[#allocation9 + $0xf8] sm:$0xff]
      %v120 = vld [vmem:[#allocation9 + $0x100] sm:$0xff]
      %v121 = vld [vmem:[#allocation9 + $0x108] sm:$0xff]
      %v122 = vld [vmem:[#allocation9 + $0x110] sm:$0xff]
      %v123 = vld [vmem:[#allocation9 + $0x118] sm:$0xff]
      %v124 = vld [vmem:[#allocation9 + $0x120] sm:$0xff]
      %v125 = vld [vmem:[#allocation9 + $0x128] sm:$0xff]
      %v126 = vld [vmem:[#allocation9 + $0x130] sm:$0xff]
      %v127 = vld [vmem:[#allocation9 + $0x138] sm:$0xff]
      %v128 = vld [vmem:[#allocation9 + $0x140] sm:$0xff]
      %v129 = vld [vmem:[#allocation9 + $0x148] sm:$0xff]
      %v130 = vld [vmem:[#allocation9 + $0x150] sm:$0xff]
      %v131 = vld [vmem:[#allocation9 + $0x158] sm:$0xff]
      %v132 = vld [vmem:[#allocation9 + $0x160] sm:$0xff]
      %v133 = vld [vmem:[#allocation9 + $0x168] sm:$0xff]
      %v134 = vld [vmem:[#allocation9 + $0x170] sm:$0xff]
      %v135 = vld [vmem:[#allocation9 + $0x178] sm:$0xff]
      %v136 = vld [vmem:[#allocation9 + $0x180] sm:$0xff]
      %v137 = vld [vmem:[#allocation9 + $0x188] sm:$0xff]
      %v138 = vld [vmem:[#allocation9 + $0x190] sm:$0xff]
      %v139 = vld [vmem:[#allocation9 + $0x198] sm:$0xff]
      %v140 = vld [vmem:[#allocation9 + $0x1a0] sm:$0xff]
      %v141 = vld [vmem:[#allocation9 + $0x1a8] sm:$0xff]
      %v142 = vld [vmem:[#allocation9 + $0x1b0] sm:$0xff]
      %v143 = vld [vmem:[#allocation9 + $0x1b8] sm:$0xff]
      %v144 = vld [vmem:[#allocation9 + $0x1c0] sm:$0xff]
      %v145 = vld [vmem:[#allocation9 + $0x1c8] sm:$0xff]
      %v146 = vld [vmem:[#allocation9 + $0x1d0] sm:$0xff]
      %v147 = vld [vmem:[#allocation9 + $0x1d8] sm:$0xff]
      %v148 = vld [vmem:[#allocation9 + $0x1e0] sm:$0xff]
      %v149 = vld [vmem:[#allocation9 + $0x1e8] sm:$0xff]
      %v150 = vld [vmem:[#allocation9 + $0x1f0] sm:$0xff]
      %v151 = vld [vmem:[#allocation9 + $0x1f8] sm:$0xff]
      %v216 = vunpack.c.l.b16 %v88
      %v217 = vunpack.c.h.b16 %v88
      %v218 = vunpack.c.l.b16 %v89
      %v219 = vunpack.c.h.b16 %v89
      %v220 = vunpack.c.l.b16 %v90
      %v221 = vunpack.c.h.b16 %v90
      %v222 = vunpack.c.l.b16 %v91
      %v223 = vunpack.c.h.b16 %v91
      %v224 = vunpack.c.l.b16 %v92
      %v225 = vunpack.c.h.b16 %v92
      %v226 = vunpack.c.l.b16 %v93
      %v227 = vunpack.c.h.b16 %v93
      %v228 = vunpack.c.l.b16 %v94
      %v229 = vunpack.c.h.b16 %v94
      %v230 = vunpack.c.l.b16 %v95
      %v231 = vunpack.c.h.b16 %v95
      %v232 = vunpack.c.l.b16 %v96
      %v233 = vunpack.c.h.b16 %v96
      %v234 = vunpack.c.l.b16 %v97
      %v235 = vunpack.c.h.b16 %v97
      %v236 = vunpack.c.l.b16 %v98
      %v237 = vunpack.c.h.b16 %v98
      %v238 = vunpack.c.l.b16 %v99
      %v239 = vunpack.c.h.b16 %v99
      %v240 = vunpack.c.l.b16 %v100
      %v241 = vunpack.c.h.b16 %v100
      %v242 = vunpack.c.l.b16 %v101
      %v243 = vunpack.c.h.b16 %v101
      %v244 = vunpack.c.l.b16 %v102
      %v245 = vunpack.c.h.b16 %v102
      %v246 = vunpack.c.l.b16 %v103
      %v247 = vunpack.c.h.b16 %v103
      %v248 = vunpack.c.l.b16 %v104
      %v249 = vunpack.c.h.b16 %v104
      %v250 = vunpack.c.l.b16 %v105
      %v251 = vunpack.c.h.b16 %v105
      %v252 = vunpack.c.l.b16 %v106
      %v253 = vunpack.c.h.b16 %v106
      %v254 = vunpack.c.l.b16 %v107
      %v255 = vunpack.c.h.b16 %v107
      %v256 = vunpack.c.l.b16 %v108
      %v257 = vunpack.c.h.b16 %v108
      %v258 = vunpack.c.l.b16 %v109
      %v259 = vunpack.c.h.b16 %v109
      %v260 = vunpack.c.l.b16 %v110
      %v261 = vunpack.c.h.b16 %v110
      %v262 = vunpack.c.l.b16 %v111
      %v263 = vunpack.c.h.b16 %v111
      %v264 = vunpack.c.l.b16 %v112
      %v265 = vunpack.c.h.b16 %v112
      %v266 = vunpack.c.l.b16 %v113
      %v267 = vunpack.c.h.b16 %v113
      %v268 = vunpack.c.l.b16 %v114
      %v269 = vunpack.c.h.b16 %v114
      %v270 = vunpack.c.l.b16 %v115
      %v271 = vunpack.c.h.b16 %v115
      %v272 = vunpack.c.l.b16 %v116
      %v273 = vunpack.c.h.b16 %v116
      %v274 = vunpack.c.l.b16 %v117
      %v275 = vunpack.c.h.b16 %v117
      %v276 = vunpack.c.l.b16 %v118
      %v277 = vunpack.c.h.b16 %v118
      %v278 = vunpack.c.l.b16 %v119
      %v279 = vunpack.c.h.b16 %v119
      %v280 = vunpack.c.l.b16 %v120
      %v281 = vunpack.c.h.b16 %v120
      %v282 = vunpack.c.l.b16 %v121
      %v283 = vunpack.c.h.b16 %v121
      %v284 = vunpack.c.l.b16 %v122
      %v285 = vunpack.c.h.b16 %v122
      %v286 = vunpack.c.l.b16 %v123
      %v287 = vunpack.c.h.b16 %v123
      %v288 = vunpack.c.l.b16 %v124
      %v289 = vunpack.c.h.b16 %v124
      %v290 = vunpack.c.l.b16 %v125
      %v291 = vunpack.c.h.b16 %v125
      %v292 = vunpack.c.l.b16 %v126
      %v293 = vunpack.c.h.b16 %v126
      %v294 = vunpack.c.l.b16 %v127
      %v295 = vunpack.c.h.b16 %v127
      %v296 = vunpack.c.l.b16 %v128
      %v297 = vunpack.c.h.b16 %v128
      %v298 = vunpack.c.l.b16 %v129
      %v299 = vunpack.c.h.b16 %v129
      %v300 = vunpack.c.l.b16 %v130
      %v301 = vunpack.c.h.b16 %v130
      %v302 = vunpack.c.l.b16 %v131
      %v303 = vunpack.c.h.b16 %v131
      %v304 = vunpack.c.l.b16 %v132
      %v305 = vunpack.c.h.b16 %v132
      %v306 = vunpack.c.l.b16 %v133
      %v307 = vunpack.c.h.b16 %v133
      %v308 = vunpack.c.l.b16 %v134
      %v309 = vunpack.c.h.b16 %v134
      %v310 = vunpack.c.l.b16 %v135
      %v311 = vunpack.c.h.b16 %v135
      %v312 = vunpack.c.l.b16 %v136
      %v313 = vunpack.c.h.b16 %v136
      %v314 = vunpack.c.l.b16 %v137
      %v315 = vunpack.c.h.b16 %v137
      %v316 = vunpack.c.l.b16 %v138
      %v317 = vunpack.c.h.b16 %v138
      %v318 = vunpack.c.l.b16 %v139
      %v319 = vunpack.c.h.b16 %v139
      %v320 = vunpack.c.l.b16 %v140
      %v321 = vunpack.c.h.b16 %v140
      %v322 = vunpack.c.l.b16 %v141
      %v323 = vunpack.c.h.b16 %v141
      %v324 = vunpack.c.l.b16 %v142
      %v325 = vunpack.c.h.b16 %v142
      %v326 = vunpack.c.l.b16 %v143
      %v327 = vunpack.c.h.b16 %v143
      %v328 = vunpack.c.l.b16 %v144
      %v329 = vunpack.c.h.b16 %v144
      %v330 = vunpack.c.l.b16 %v145
      %v331 = vunpack.c.h.b16 %v145
      %v332 = vunpack.c.l.b16 %v146
      %v333 = vunpack.c.h.b16 %v146
      %v334 = vunpack.c.l.b16 %v147
      %v335 = vunpack.c.h.b16 %v147
      %v336 = vunpack.c.l.b16 %v148
      %v337 = vunpack.c.h.b16 %v148
      %v338 = vunpack.c.l.b16 %v149
      %v339 = vunpack.c.h.b16 %v149
      %v340 = vunpack.c.l.b16 %v150
      %v341 = vunpack.c.h.b16 %v150
      %v342 = vunpack.c.l.b16 %v151
      %v343 = vunpack.c.h.b16 %v151
      %v344 = vpack.c.b16 %v220, %v216
      %v345 = vpack.c.b16 %v221, %v217
      %v346 = vpack.c.b16 %v222, %v218
      %v347 = vpack.c.b16 %v223, %v219
      %v348 = vpack.c.b16 %v228, %v224
      %v349 = vpack.c.b16 %v229, %v225
      %v350 = vpack.c.b16 %v230, %v226
      %v351 = vpack.c.b16 %v231, %v227
      %v352 = vpack.c.b16 %v236, %v232
      %v353 = vpack.c.b16 %v237, %v233
      %v354 = vpack.c.b16 %v238, %v234
      %v355 = vpack.c.b16 %v239, %v235
      %v356 = vpack.c.b16 %v244, %v240
      %v357 = vpack.c.b16 %v245, %v241
      %v358 = vpack.c.b16 %v246, %v242
      %v359 = vpack.c.b16 %v247, %v243
      %v360 = vpack.c.b16 %v252, %v248
      %v361 = vpack.c.b16 %v253, %v249
      %v362 = vpack.c.b16 %v254, %v250
      %v363 = vpack.c.b16 %v255, %v251
      %v364 = vpack.c.b16 %v260, %v256
      %v365 = vpack.c.b16 %v261, %v257
      %v366 = vpack.c.b16 %v262, %v258
      %v367 = vpack.c.b16 %v263, %v259
      %v368 = vpack.c.b16 %v268, %v264
      %v369 = vpack.c.b16 %v269, %v265
      %v370 = vpack.c.b16 %v270, %v266
      %v371 = vpack.c.b16 %v271, %v267
      %v372 = vpack.c.b16 %v276, %v272
      %v373 = vpack.c.b16 %v277, %v273
      %v374 = vpack.c.b16 %v278, %v274
      %v375 = vpack.c.b16 %v279, %v275
      %v376 = vpack.c.b16 %v284, %v280
      %v377 = vpack.c.b16 %v285, %v281
      %v378 = vpack.c.b16 %v286, %v282
      %v379 = vpack.c.b16 %v287, %v283
      %v380 = vpack.c.b16 %v292, %v288
      %v381 = vpack.c.b16 %v293, %v289
      %v382 = vpack.c.b16 %v294, %v290
      %v383 = vpack.c.b16 %v295, %v291
      %v384 = vpack.c.b16 %v300, %v296
      %v385 = vpack.c.b16 %v301, %v297
      %v386 = vpack.c.b16 %v302, %v298
      %v387 = vpack.c.b16 %v303, %v299
      %v388 = vpack.c.b16 %v308, %v304
      %v389 = vpack.c.b16 %v309, %v305
      %v390 = vpack.c.b16 %v310, %v306
      %v391 = vpack.c.b16 %v311, %v307
      %v392 = vpack.c.b16 %v316, %v312
      %v393 = vpack.c.b16 %v317, %v313
      %v394 = vpack.c.b16 %v318, %v314
      %v395 = vpack.c.b16 %v319, %v315
      %v396 = vpack.c.b16 %v324, %v320
      %v397 = vpack.c.b16 %v325, %v321
      %v398 = vpack.c.b16 %v326, %v322
      %v399 = vpack.c.b16 %v327, %v323
      %v400 = vpack.c.b16 %v332, %v328
      %v401 = vpack.c.b16 %v333, %v329
      %v402 = vpack.c.b16 %v334, %v330
      %v403 = vpack.c.b16 %v335, %v331
      %v404 = vpack.c.b16 %v340, %v336
      %v405 = vpack.c.b16 %v341, %v337
      %v406 = vpack.c.b16 %v342, %v338
      %v407 = vpack.c.b16 %v343, %v339
      %472 = vmatprep.subr.bf16.mxu0 %v345
      %473 = vmatpush1.bf16.msra.mxu0 %v344
      %474 = vmatprep.subr.bf16.mxu0 %v349
      %475 = vmatpush1.bf16.msra.mxu0 %v348
      %476 = vmatprep.subr.bf16.mxu0 %v353
      %477 = vmatpush1.bf16.msra.mxu0 %v352
      %478 = vmatprep.subr.bf16.mxu0 %v357
      %479 = vmatpush1.bf16.msra.mxu0 %v356
      %480 = vmatprep.subr.bf16.mxu0 %v361
      %481 = vmatpush1.bf16.msra.mxu0 %v360
      %482 = vmatprep.subr.bf16.mxu0 %v365
      %483 = vmatpush1.bf16.msra.mxu0 %v364
      %484 = vmatprep.subr.bf16.mxu0 %v369
      %485 = vmatpush1.bf16.msra.mxu0 %v368
      %486 = vmatprep.subr.bf16.mxu0 %v373
      %487 = vmatpush1.bf16.msra.mxu0 %v372
      %488 = vmatprep.subr.bf16.mxu0 %v377
      %489 = vmatpush1.bf16.msra.mxu0 %v376
      %490 = vmatprep.subr.bf16.mxu0 %v381
      %491 = vmatpush1.bf16.msra.mxu0 %v380
      %492 = vmatprep.subr.bf16.mxu0 %v385
      %493 = vmatpush1.bf16.msra.mxu0 %v384
      %494 = vmatprep.subr.bf16.mxu0 %v389
      %495 = vmatpush1.bf16.msra.mxu0 %v388
      %496 = vmatprep.subr.bf16.mxu0 %v393
      %497 = vmatpush1.bf16.msra.mxu0 %v392
      %498 = vmatprep.subr.bf16.mxu0 %v397
      %499 = vmatpush1.bf16.msra.mxu0 %v396
      %500 = vmatprep.subr.bf16.mxu0 %v401
      %501 = vmatpush1.bf16.msra.mxu0 %v400
      %502 = vmatprep.subr.bf16.mxu0 %v405
      %503 = vmatpush1.bf16.msra.mxu0 %v404
      %504 = vmatprep.mubr.bf16.mxu0 %v87
      %505 = vmatmul.mubr.bf16.gmra.mrb[0].mxu0 %v86
      %v506 = vpop.f32.mrb[0].mxu0
      %v507 = vadd.f32 %v55, %v506
      %v508 = vpop.f32.mrb[0].mxu0
      %v509 = vadd.f32 %v59, %v508
      %v510 = vpop.f32.mrb[0].mxu0
      %v511 = vpop.f32.mrb[0].mxu0
      %512 = vdwg.mxu0
      %513 = vmatprep.subr.bf16.mxu0 %v347
      %514 = vmatpush1.bf16.msra.mxu0 %v346
      %515 = vmatprep.subr.bf16.mxu0 %v351
      %516 = vmatpush1.bf16.msra.mxu0 %v350
      %517 = vmatprep.subr.bf16.mxu0 %v355
      %518 = vmatpush1.bf16.msra.mxu0 %v354
      %519 = vmatprep.subr.bf16.mxu0 %v359
      %520 = vmatpush1.bf16.msra.mxu0 %v358
      %521 = vmatprep.subr.bf16.mxu0 %v363
      %522 = vmatpush1.bf16.msra.mxu0 %v362
      %523 = vmatprep.subr.bf16.mxu0 %v367
      %524 = vmatpush1.bf16.msra.mxu0 %v366
      %525 = vmatprep.subr.bf16.mxu0 %v371
      %526 = vmatpush1.bf16.msra.mxu0 %v370
      %527 = vmatprep.subr.bf16.mxu0 %v375
      %528 = vmatpush1.bf16.msra.mxu0 %v374
      %529 = vmatprep.subr.bf16.mxu0 %v379
      %530 = vmatpush1.bf16.msra.mxu0 %v378
      %531 = vmatprep.subr.bf16.mxu0 %v383
      %532 = vmatpush1.bf16.msra.mxu0 %v382
      %533 = vmatprep.subr.bf16.mxu0 %v387
      %534 = vmatpush1.bf16.msra.mxu0 %v386
      %535 = vmatprep.subr.bf16.mxu0 %v391
      %536 = vmatpush1.bf16.msra.mxu0 %v390
      %537 = vmatprep.subr.bf16.mxu0 %v395
      %538 = vmatpush1.bf16.msra.mxu0 %v394
      %539 = vmatprep.subr.bf16.mxu0 %v399
      %540 = vmatpush1.bf16.msra.mxu0 %v398
      %541 = vmatprep.subr.bf16.mxu0 %v403
      %542 = vmatpush1.bf16.msra.mxu0 %v402
      %543 = vmatprep.subr.bf16.mxu0 %v407
      %544 = vmatpush1.bf16.msra.mxu0 %v406
      %545 = vmatprep.mubr.bf16.mxu0 %v87
      %546 = vmatmul.mubr.bf16.gmra.mrb[0].mxu0 %v86
      %v547 = vpop.f32.mrb[0].mxu0
      %v548 = vadd.f32 %v63, %v547
      %v549 = vpop.f32.mrb[0].mxu0
      %v550 = vadd.f32 %v67, %v549
      %v551 = vpop.f32.mrb[0].mxu0
      %v552 = vpop.f32.mrb[0].mxu0
      %553 = vdwg.mxu0
      %v554 = vxor.u32 %v507, 2147483648
      %v555 = vmul.f32 %v554, 1.442695
      %v556 = vpow.pop %v555
      %v557 = vadd.f32 %v556, 1.0
      %v558 = vrcp.pop %v557
      %v559 = vmul.f32 1.0, %v558
      %v560 = vxor.u32 %v509, 2147483648
      %v561 = vmul.f32 %v560, 1.442695
      %v562 = vpow.pop %v561
      %v563 = vadd.f32 %v562, 1.0
      %v564 = vrcp.pop %v563
      %v565 = vmul.f32 1.0, %v564
      %v566 = vtanh.pop %v548
      %v567 = vxor.u32 %v550, 2147483648
      %v568 = vmul.f32 %v567, 1.442695
      %v569 = vpow.pop %v568
      %v570 = vadd.f32 %v569, 1.0
      %v571 = vrcp.pop %v570
      %v572 = vmul.f32 1.0, %v571
      %v573 = vmul.f32 %v565, %v83
      %v574 = vmul.f32 %v559, %v566
      %v575 = vadd.f32 %v573, %v574
      %v576 = vtanh.pop %v575
      %v577 = vmul.f32 %v572, %v576
      %v578 = vstv %s77
      %vm579 = vcmp.gt.s32.totalorder %v72, %v578
      %v580 = vsel %vm579, 1, 0
      %581 = vset.pattern.permute.xlu0 0
      %582 = vperm.xlu0 %581, %v580
      %v583 = vpop.permute.xlu0 %582
      %vm584 = vcmp.eq.s32.totalorder %v583, 1
      %v585 = vsel %vm584, %v577, %v82
      %586 = vst [vmem:[#allocation2] sm:$0xff] %v585
      %v587 = vsel %vm584, %v575, %v83
      %588 = vst [vmem:[#allocation3] sm:$0xff] %v587
    $region30: #{tpu_custom_call.1} parent=1 // loop_footer
      %s79 = sadd.s32 %s77, 1
    $region31: #{tpu_custom_call.1} parent=1 // loop_footer_branch
      %76 = sbr.rel target = $region27
    $region32: #{tpu_custom_call.1} parent=1 // loop_exit
      _
    %v589 = vld [vmem:[#allocation2] sm:$0xff]
    %590 = vst [vmem:[#allocation11] sm:$0xff] %v589
    // Predicated region
    $region33: #{tpu_custom_call.1} parent=1 // pred_check
      _
    $region34: #{tpu_custom_call.1} parent=1 // pred_check_branch
      %592 = sbr.rel (0) target = $region36
    $region35: #{tpu_custom_call.1} parent=1 // pred_region
      %s594 = ssub.s32 128, 128
      %595 = vsyncadd [#allocation8], %s594
      %s597 = sshll.u32 [#allocation11], 4
      %s598 = int_to_ptr.vmem [resolvable:$true] %s597
      %600 = dma.vmem_to_hbm [thread:$0]  %s598, 128, %s5, [#allocation8]
    $region36: #{tpu_custom_call.1} parent=1 // pred_fallthru
      _
    // Predicated region
    $region37: #{tpu_custom_call.1} parent=1 // pred_check
      _
    $region38: #{tpu_custom_call.1} parent=1 // pred_check_branch
      %602 = sbr.rel (0) target = $region40
    $region39: #{tpu_custom_call.1} parent=1 // pred_region
      %603 = dma.done [#allocation8], 128
    $region40: #{tpu_custom_call.1} parent=1 // pred_fallthru
      _
    %604 = vsyncpa [#allocation7], 1
    %605 = vsyncpa [#allocation10], 1
    %606 = vsyncpa [#allocation8], 1

</llo_original>
